<compile_context>
chip_gen: v7x
topology: tpu7x:2x2x1
jax: 0.10.0
libtpu: 0.0.40
codegen_flags: <defaults>
</compile_context>

<pallas_src>
import jax
import jax.numpy as jnp
from jax.experimental import pallas as pl
from jax.experimental.pallas import tpu as pltpu


def _round_up(x: int, m: int) -> int:
    return ((x + m - 1) // m) * m


def vq_kernel(z_ref, a_ref, c_ref, b_ref, be_ref, out_ref, idx_ref):
    """One row-tile of the fused compress -> argmin -> gather -> expand pass.

    z_ref:   (TM, C_pad)    bf16  row tile of the (column-padded) flat input
    a_ref:   (C_pad, N_pad) bf16  pre-folded score matrix   -(Wc^T @ E^T)
    c_ref:   (1, N_pad)     f32   pre-folded score offset  0.5*|E|^2 - E @ bc
                                  (+BIG on padded codebook lanes)
    b_ref:   (N_pad, C_pad) f32   pre-folded output matrix  E @ We^T
    be_ref:  (1, C_pad)     f32   expand bias
    out_ref: (TM, C_pad)    f32   quantized + expanded rows
    idx_ref: (TM, 1)        i32   selected codebook index per row
    """
    # scores is an affine-equivalent of the squared distance (same argmin):
    #   scores[m, n] = 0.5*|e_n|^2 - <compress(z_m), e_n>
    # bf16 MXU operands, f32 accumulate; the f32 offset add stays on the VPU.
    scores = jnp.dot(z_ref[...], a_ref[...],
                     preferred_element_type=jnp.float32) + c_ref[...]

    n_pad = scores.shape[1]
    iota = jax.lax.broadcasted_iota(jnp.int32, scores.shape, 1)

    # First-occurrence argmin along the codebook axis (matches torch.argmin):
    # one XLU min-reduce, one fused VPU compare+select, one XLU min-reduce.
    # TODO(synk): a single-sweep fused argmin (or an n_e-blocked running
    # (min, idx) accumulator for very large codebooks) would drop one XLU pass.
    smin = jnp.min(scores, axis=1, keepdims=True)
    idx = jnp.min(jnp.where(scores == smin, iota, n_pad), axis=1, keepdims=True)
    idx_ref[...] = idx

    # Codebook gather (pre-folded with the expand weight) as a one-hot matmul,
    # kept in f32 so the output matches the f32 reference.
    # TODO(synk): for codebooks with n_e in the thousands a row gather of b_ref
    # halves the MXU work and drops the (TM, N_pad) one-hot temporary.
    onehot = (iota == idx).astype(jnp.float32)                    # exact 0/1
    out_ref[...] = jnp.dot(onehot, b_ref[...],
                           preferred_element_type=jnp.float32) + be_ref[...]


def _make_call(M, C_pad, N_pad, tm_eff, grid_m, vmem_limit, cost, single_buffer):
    inv = {"pipeline_mode": pl.Buffered(1)} if single_buffer else {}
    return pl.pallas_call(
        vq_kernel,
        out_shape=(jax.ShapeDtypeStruct((M, C_pad), jnp.float32),
                   jax.ShapeDtypeStruct((M, 1), jnp.int32)),
        grid_spec=pltpu.PrefetchScalarGridSpec(
            num_scalar_prefetch=0,
            grid=(grid_m,),
            in_specs=[
                pl.BlockSpec((tm_eff, C_pad), lambda i: (i, 0)),        # z rows
                pl.BlockSpec((C_pad, N_pad), lambda i: (0, 0), **inv),  # A
                pl.BlockSpec((1, N_pad), lambda i: (0, 0), **inv),      # c
                pl.BlockSpec((N_pad, C_pad), lambda i: (0, 0), **inv),  # B
                pl.BlockSpec((1, C_pad), lambda i: (0, 0), **inv),      # be
            ],
            out_specs=(pl.BlockSpec((tm_eff, C_pad), lambda i: (i, 0)),
                       pl.BlockSpec((tm_eff, 1), lambda i: (i, 0))),
        ),
        compiler_params=pltpu.CompilerParams(
            dimension_semantics=("parallel",),
            vmem_limit_bytes=vmem_limit,
        ),
        cost_estimate=cost,
    )


def vector_quantizer_forward(z, wc, bc, emb, we, be, *, tm=512):
    """Eval-mode forward of VectorQuantizer.

    z:   (B, N, C_in)
    wc:  (D, C_in)  compress weight (PyTorch (out, in) convention); bc: (D,)
    emb: (n_e, D)   codebook
    we:  (C_in, D)  expand weight; be: (C_in,)
    Returns (z_q, loss, indices): z_q (B, N, C_in) f32, loss == 0.0 (eval),
    indices (B, N) int32 (the is_pre_cal eval path's return value).
    """
    B, N, C_in = z.shape
    n_e, D = emb.shape
    M = B * N

    # Lane-dense padding: round C_in and n_e up to multiples of 128.
    C_pad = _round_up(C_in, 128)
    N_pad = _round_up(n_e, 128)

    f32 = jnp.float32
    emb32, wc32, bc32, we32, be32 = (x.astype(f32) for x in (emb, wc, bc, we, be))

    # --- grid-invariant precompute (hoisted out of the kernel) --------------
    a_mat = -(wc32.T @ emb32.T)                                   # (C_in, n_e)
    c_vec = 0.5 * jnp.sum(emb32 ** 2, axis=1) - emb32 @ bc32      # (n_e,)
    b_mat = emb32 @ we32.T                                        # (n_e, C_in)

    BIG = jnp.float32(1e30)   # padded codes can never win the argmin
    a_pad = jnp.zeros((C_pad, N_pad), f32).at[:C_in, :n_e].set(a_mat)
    a_pad = a_pad.astype(jnp.bfloat16)                            # MXU operand
    c_pad = jnp.full((1, N_pad), BIG, dtype=f32).at[0, :n_e].set(c_vec)
    b_pad = jnp.zeros((N_pad, C_pad), f32).at[:n_e, :C_in].set(b_mat)
    be_pad = jnp.zeros((1, C_pad), f32).at[0, :C_in].set(be32)

    # z: bf16 MXU operand (halves the dominant HBM read); column-pad to C_pad
    # (a no-op whenever C_in is already a multiple of 128).
    z_flat = z.reshape(M, C_in)
    if C_pad != C_in:
        z_flat = jnp.pad(z_flat, ((0, 0), (0, C_pad - C_in)))
    z_flat = z_flat.astype(jnp.bfloat16)

    # --- row tiling ----------------------------------------------------------
    # 16-row granularity (bf16 sublane packing).  Cap tm so the (tm, N_pad)
    # scores/iota/one-hot temporaries stay within a few MiB of VMEM, and keep
    # >= 2 grid steps whenever M allows it (both v7x TensorCores busy).  No row
    # padding: cdiv grid + masked boundary stores handle a ragged tail.
    tm_cap = max(16, ((4 << 20) // (12 * N_pad)) // 16 * 16)
    tm_eff = min(_round_up(tm, 16), tm_cap, max(16, _round_up(pl.cdiv(M, 2), 16)))
    grid_m = pl.cdiv(M, tm_eff)

    vmem_bytes = (2 * tm_eff * C_pad * 2          # z tile (double-buffered, bf16)
                  + 2 * tm_eff * C_pad * 4        # out tile (double-buffered)
                  + 2 * tm_eff * 4                # idx tile
                  + C_pad * N_pad * 2             # A (bf16, single-buffered)
                  + (N_pad + C_pad) * 4           # c, be
                  + N_pad * C_pad * 4             # B
                  + 3 * tm_eff * N_pad * 4)       # scores / iota / one-hot
    vmem_limit = int(min(max(4 * vmem_bytes, 32 << 20), 64 << 20))

    cost = pl.CostEstimate(
        flops=4 * M * C_pad * N_pad,
        transcendentals=0,
        bytes_accessed=(M * C_pad * 2 + C_pad * N_pad * 2 + N_pad * 4
                        + N_pad * C_pad * 4 + C_pad * 4 + M * C_pad * 4 + M * 4),
    )

    args = (z_flat, a_pad, c_pad, b_pad, be_pad)
    try:
        out, idx = _make_call(M, C_pad, N_pad, tm_eff, grid_m, vmem_limit, cost,
                              single_buffer=True)(*args)
        jax.block_until_ready((out, idx))
    except Exception:
        # Fallback if this JAX/Mosaic build rejects pipeline_mode=Buffered(1)
        # on the grid-invariant operands (it is only a VMEM optimization).
        out, idx = _make_call(M, C_pad, N_pad, tm_eff, grid_m, vmem_limit, cost,
                              single_buffer=False)(*args)

    z_q = (out[:, :C_in] if C_pad != C_in else out).reshape(B, N, C_in)
    indices = idx.reshape(B, N)
    loss = jnp.float32(0.0)   # eval-mode return value (torch.tensor(0.0))
    return z_q, loss, indices


def reference_forward(z, wc, bc, emb, we, be):
    """Pure-JAX f32 reference mirroring the PyTorch eval forward."""
    B, N, C_in = z.shape
    zf = z.reshape(-1, C_in) @ wc.T + bc                          # compress
    d = (jnp.sum(zf ** 2, axis=1, keepdims=True)
         + jnp.sum(emb ** 2, axis=1)
         - 2.0 * (zf @ emb.T))                                    # (M, n_e)
    idx = jnp.argmin(d, axis=1)
    zq = (emb[idx] @ we.T + be).reshape(B, N, C_in)               # gather+expand
    return zq, d, idx


if __name__ == "__main__":
    # Module hyper-params (small, consistent with __init__)
    n_e = 64            # codebook_size
    channels_in = 32
    channels_dim = 16   # codebook_dim
    B, N = 2, 8         # input: (B, N, channels_in)

    key = jax.random.PRNGKey(0)
    k_emb, k_wc, k_bc, k_we, k_be, k_z = jax.random.split(key, 6)

    # Embedding: trunc_normal_(mean=0, std=1, a=-3, b=3)
    emb = jax.random.truncated_normal(
        k_emb, -3.0, 3.0, (n_e, channels_dim), dtype=jnp.float32)

    # Linear layers: deterministic uniform init (synthetic; shapes match nn.Linear)
    lim_c = 1.0 / (channels_in ** 0.5)
    wc = jax.random.uniform(k_wc, (channels_dim, channels_in), jnp.float32,
                            -lim_c, lim_c)
    bc = jax.random.uniform(k_bc, (channels_dim,), jnp.float32, -lim_c, lim_c)

    lim_e = 1.0 / (channels_dim ** 0.5)
    we = jax.random.uniform(k_we, (channels_in, channels_dim), jnp.float32,
                            -lim_e, lim_e)
    be = jax.random.uniform(k_be, (channels_in,), jnp.float32, -lim_e, lim_e)

    z = jax.random.normal(k_z, (B, N, channels_in), dtype=jnp.float32)

    z_q, loss, idx_ker = vector_quantizer_forward(z, wc, bc, emb, we, be)
    jax.block_until_ready(z_q)

    zq_ref, d_ref, idx_ref = reference_forward(z, wc, bc, emb, we, be)
    M = B * N
    idx_k = idx_ker.reshape(-1)
    rows = jnp.arange(M)

    # (1) The kernel's chosen code must be (near-)optimal; tolerance covers
    #     bf16 rounding of the score-matmul operands on near-tied codes.
    d_sel = d_ref[rows, idx_k]
    d_min = d_ref[rows, idx_ref]
    assert bool(jnp.all(d_sel <= d_min + (1e-1 + 3e-2 * jnp.abs(d_min)))), \
        "kernel selected a code that is not (near-)optimal"

    # (2) The output must be the f32 expand of the chosen code.
    zq_expect = (emb[idx_k] @ we.T + be).reshape(B, N, channels_in)
    assert z_q.shape == (B, N, channels_in)
    assert jnp.allclose(z_q, zq_expect, atol=1e-4, rtol=1e-4), \
        "output does not match expand(codebook[idx])"

    # (3) Where the kernel index agrees with the f32 reference (the typical,
    #     non-tied case) the output matches the reference as well.
    match = (idx_k == idx_ref).reshape(B, N, 1)
    assert jnp.allclose(jnp.where(match, z_q - zq_ref, 0.0), 0.0, atol=1e-4), \
        "mismatch vs f32 reference on agreeing rows"

    assert float(loss) == 0.0
    print("KERNEL_OK")
</pallas_src>

<mosaic_0001>
module attributes {stable_mosaic.version = 11 : i64} {
  func.func @vq_kernel(%arg0: i32, %arg1: memref<16x128xbf16, #tpu.memory_space<vmem>>, %arg2: memref<128x128xbf16, #tpu.memory_space<vmem>>, %arg3: memref<1x128xf32, #tpu.memory_space<vmem>>, %arg4: memref<128x128xf32, #tpu.memory_space<vmem>>, %arg5: memref<1x128xf32, #tpu.memory_space<vmem>>, %arg6: memref<16x128xf32, #tpu.memory_space<vmem>>, %arg7: memref<16x1xi32, #tpu.memory_space<vmem>>) attributes {dimension_semantics = [#tpu.dimension_semantics<parallel>], iteration_bounds = array<i64: 1>, scalar_prefetch = 0 : i64, scratch_operands = 0 : i64, tpu.core_type = #tpu.core_type<tc>, window_params = [{transform_indices = @transform_0, window_bounds = array<i64: 16, 128>}, {pipeline_mode = #tpu.pipeline_mode<synchronous>, transform_indices = @transform_1, window_bounds = array<i64: 128, 128>}, {pipeline_mode = #tpu.pipeline_mode<synchronous>, transform_indices = @transform_2, window_bounds = array<i64: 1, 128>}, {pipeline_mode = #tpu.pipeline_mode<synchronous>, transform_indices = @transform_3, window_bounds = array<i64: 128, 128>}, {pipeline_mode = #tpu.pipeline_mode<synchronous>, transform_indices = @transform_4, window_bounds = array<i64: 1, 128>}, {transform_indices = @transform_5, window_bounds = array<i64: 16, 128>}, {transform_indices = @transform_6, window_bounds = array<i64: 16, 1>}]} {
    %c0 = arith.constant 0 : index
    %c0_0 = arith.constant 0 : index
    %0 = vector.load %arg1[%c0, %c0_0] : memref<16x128xbf16, #tpu.memory_space<vmem>>, vector<16x128xbf16>
    %c0_1 = arith.constant 0 : index
    %c0_2 = arith.constant 0 : index
    %1 = vector.load %arg2[%c0_1, %c0_2] : memref<128x128xbf16, #tpu.memory_space<vmem>>, vector<128x128xbf16>
    %cst = arith.constant dense<0.000000e+00> : vector<16x128xf32>
    %2 = tpu.matmul %0, %1, %cst {dimension_numbers = #tpu.dot_dimension_numbers<[1], [0], [0], [1], [0, 0, 1, 1], [], []>} : vector<16x128xbf16>, vector<128x128xbf16>, vector<16x128xf32> -> vector<16x128xf32>
    %c0_3 = arith.constant 0 : index
    %c0_4 = arith.constant 0 : index
    %3 = vector.load %arg3[%c0_3, %c0_4] : memref<1x128xf32, #tpu.memory_space<vmem>>, vector<1x128xf32>
    %4 = vector.broadcast %3 : vector<1x128xf32> to vector<16x128xf32>
    %5 = arith.addf %2, %4 : vector<16x128xf32>
    %6 = tpu.iota {dimensions = array<i32: 1>} : vector<16x128xi32>
    %cst_5 = arith.constant dense<0x7F800000> : vector<16xf32>
    %7 = vector.multi_reduction <minimumf>, %5, %cst_5 [1] : vector<16x128xf32> to vector<16xf32>
    %8 = vector.shape_cast %7 : vector<16xf32> to vector<16x1xf32>
    %9 = vector.broadcast %8 : vector<16x1xf32> to vector<16x128xf32>
    %10 = arith.cmpf oeq, %5, %9 : vector<16x128xf32>
    %c128_i32 = arith.constant 128 : i32
    %11 = vector.broadcast %c128_i32 : i32 to vector<16x128xi32>
    %12 = arith.select %10, %6, %11 : vector<16x128xi1>, vector<16x128xi32>
    %cst_6 = arith.constant dense<2147483647> : vector<16xi32>
    %13 = vector.multi_reduction <minsi>, %12, %cst_6 [1] : vector<16x128xi32> to vector<16xi32>
    %14 = vector.shape_cast %13 : vector<16xi32> to vector<16x1xi32>
    %c0_7 = arith.constant 0 : index
    %c0_8 = arith.constant 0 : index
    %15 = vector.load %arg7[%c0_7, %c0_8] : memref<16x1xi32, #tpu.memory_space<vmem>>, vector<16x1xi32>
    tpu.vector_store %arg7[%c0_7, %c0_8], %14 {strides = array<i32>} : memref<16x1xi32, #tpu.memory_space<vmem>>, vector<16x1xi32>,
    %16 = vector.broadcast %14 : vector<16x1xi32> to vector<16x128xi32>
    %17 = arith.cmpi eq, %6, %16 : vector<16x128xi32>
    %18 = arith.extui %17 : vector<16x128xi1> to vector<16x128xi32>
    %19 = arith.sitofp %18 : vector<16x128xi32> to vector<16x128xf32>
    %c0_9 = arith.constant 0 : index
    %c0_10 = arith.constant 0 : index
    %20 = vector.load %arg4[%c0_9, %c0_10] : memref<128x128xf32, #tpu.memory_space<vmem>>, vector<128x128xf32>
    %cst_11 = arith.constant dense<0.000000e+00> : vector<16x128xf32>
    %21 = tpu.matmul %19, %20, %cst_11 {dimension_numbers = #tpu.dot_dimension_numbers<[1], [0], [0], [1], [0, 0, 1, 1], [], []>} : vector<16x128xf32>, vector<128x128xf32>, vector<16x128xf32> -> vector<16x128xf32>
    %c0_12 = arith.constant 0 : index
    %c0_13 = arith.constant 0 : index
    %22 = vector.load %arg5[%c0_12, %c0_13] : memref<1x128xf32, #tpu.memory_space<vmem>>, vector<1x128xf32>
    %23 = vector.broadcast %22 : vector<1x128xf32> to vector<16x128xf32>
    %24 = arith.addf %21, %23 : vector<16x128xf32>
    %c0_14 = arith.constant 0 : index
    %c0_15 = arith.constant 0 : index
    %25 = vector.load %arg6[%c0_14, %c0_15] : memref<16x128xf32, #tpu.memory_space<vmem>>, vector<16x128xf32>
    tpu.vector_store %arg6[%c0_14, %c0_15], %24 {strides = array<i32>} : memref<16x128xf32, #tpu.memory_space<vmem>>, vector<16x128xf32>,
    return
  }
  func.func @transform_0(%arg0: i32) -> (i32, i32) {
    %c0_i32 = arith.constant 0 : i32
    %c0_i32_0 = arith.constant 0 : i32
    return %arg0, %c0_i32 : i32, i32
  }
  func.func @transform_1(%arg0: i32) -> (i32, i32) {
    %c0_i32 = arith.constant 0 : i32
    %c0_i32_0 = arith.constant 0 : i32
    %c0_i32_1 = arith.constant 0 : i32
    return %c0_i32, %c0_i32_0 : i32, i32
  }
  func.func @transform_2(%arg0: i32) -> (i32, i32) {
    %c0_i32 = arith.constant 0 : i32
    %c0_i32_0 = arith.constant 0 : i32
    %c0_i32_1 = arith.constant 0 : i32
    return %c0_i32, %c0_i32_0 : i32, i32
  }
  func.func @transform_3(%arg0: i32) -> (i32, i32) {
    %c0_i32 = arith.constant 0 : i32
    %c0_i32_0 = arith.constant 0 : i32
    %c0_i32_1 = arith.constant 0 : i32
    return %c0_i32, %c0_i32_0 : i32, i32
  }
  func.func @transform_4(%arg0: i32) -> (i32, i32) {
    %c0_i32 = arith.constant 0 : i32
    %c0_i32_0 = arith.constant 0 : i32
    %c0_i32_1 = arith.constant 0 : i32
    return %c0_i32, %c0_i32_0 : i32, i32
  }
  func.func @transform_5(%arg0: i32) -> (i32, i32) {
    %c0_i32 = arith.constant 0 : i32
    %c0_i32_0 = arith.constant 0 : i32
    return %arg0, %c0_i32 : i32, i32
  }
  func.func @transform_6(%arg0: i32) -> (i32, i32) {
    %c0_i32 = arith.constant 0 : i32
    %c0_i32_0 = arith.constant 0 : i32
    return %arg0, %c0_i32 : i32, i32
  }
}

module attributes {stable_mosaic.version = 11 : i64} {
  func.func @vq_kernel(%arg0: i32, %arg1: memref<16x128xbf16, #tpu.memory_space<vmem>>, %arg2: memref<128x128xbf16, #tpu.memory_space<vmem>>, %arg3: memref<1x128xf32, #tpu.memory_space<vmem>>, %arg4: memref<128x128xf32, #tpu.memory_space<vmem>>, %arg5: memref<1x128xf32, #tpu.memory_space<vmem>>, %arg6: memref<16x128xf32, #tpu.memory_space<vmem>>, %arg7: memref<16x1xi32, #tpu.memory_space<vmem>>) attributes {dimension_semantics = [#tpu.dimension_semantics<parallel>], iteration_bounds = array<i64: 1>, scalar_prefetch = 0 : i64, scratch_operands = 0 : i64, tpu.core_type = #tpu.core_type<tc>, window_params = [{transform_indices = @transform_0, window_bounds = array<i64: 16, 128>}, {pipeline_mode = #tpu.pipeline_mode<synchronous>, transform_indices = @transform_1, window_bounds = array<i64: 128, 128>}, {pipeline_mode = #tpu.pipeline_mode<synchronous>, transform_indices = @transform_2, window_bounds = array<i64: 1, 128>}, {pipeline_mode = #tpu.pipeline_mode<synchronous>, transform_indices = @transform_3, window_bounds = array<i64: 128, 128>}, {pipeline_mode = #tpu.pipeline_mode<synchronous>, transform_indices = @transform_4, window_bounds = array<i64: 1, 128>}, {transform_indices = @transform_5, window_bounds = array<i64: 16, 128>}, {transform_indices = @transform_6, window_bounds = array<i64: 16, 1>}]} {
    %c0 = arith.constant 0 : index
    %c0_0 = arith.constant 0 : index
    %0 = vector.load %arg1[%c0, %c0_0] : memref<16x128xbf16, #tpu.memory_space<vmem>>, vector<16x128xbf16>
    %c0_1 = arith.constant 0 : index
    %c0_2 = arith.constant 0 : index
    %1 = vector.load %arg2[%c0_1, %c0_2] : memref<128x128xbf16, #tpu.memory_space<vmem>>, vector<128x128xbf16>
    %cst = arith.constant dense<0.000000e+00> : vector<16x128xf32>
    %2 = tpu.matmul %0, %1, %cst {dimension_numbers = #tpu.dot_dimension_numbers<[1], [0], [0], [1], [0, 0, 1, 1], [], []>} : vector<16x128xbf16>, vector<128x128xbf16>, vector<16x128xf32> -> vector<16x128xf32>
    %c0_3 = arith.constant 0 : index
    %c0_4 = arith.constant 0 : index
    %3 = vector.load %arg3[%c0_3, %c0_4] : memref<1x128xf32, #tpu.memory_space<vmem>>, vector<1x128xf32>
    %4 = vector.broadcast %3 : vector<1x128xf32> to vector<16x128xf32>
    %5 = arith.addf %2, %4 : vector<16x128xf32>
    %6 = tpu.iota {dimensions = array<i32: 1>} : vector<16x128xi32>
    %cst_5 = arith.constant dense<0x7F800000> : vector<16xf32>
    %7 = vector.multi_reduction <minimumf>, %5, %cst_5 [1] : vector<16x128xf32> to vector<16xf32>
    %8 = vector.shape_cast %7 : vector<16xf32> to vector<16x1xf32>
    %9 = vector.broadcast %8 : vector<16x1xf32> to vector<16x128xf32>
    %10 = arith.cmpf oeq, %5, %9 : vector<16x128xf32>
    %c128_i32 = arith.constant 128 : i32
    %11 = vector.broadcast %c128_i32 : i32 to vector<16x128xi32>
    %12 = arith.select %10, %6, %11 : vector<16x128xi1>, vector<16x128xi32>
    %cst_6 = arith.constant dense<2147483647> : vector<16xi32>
    %13 = vector.multi_reduction <minsi>, %12, %cst_6 [1] : vector<16x128xi32> to vector<16xi32>
    %14 = vector.shape_cast %13 : vector<16xi32> to vector<16x1xi32>
    %c0_7 = arith.constant 0 : index
    %c0_8 = arith.constant 0 : index
    %15 = vector.load %arg7[%c0_7, %c0_8] : memref<16x1xi32, #tpu.memory_space<vmem>>, vector<16x1xi32>
    tpu.vector_store %arg7[%c0_7, %c0_8], %14 {strides = array<i32>} : memref<16x1xi32, #tpu.memory_space<vmem>>, vector<16x1xi32>,
    %16 = vector.broadcast %14 : vector<16x1xi32> to vector<16x128xi32>
    %17 = arith.cmpi eq, %6, %16 : vector<16x128xi32>
    %18 = arith.extui %17 : vector<16x128xi1> to vector<16x128xi32>
    %19 = arith.sitofp %18 : vector<16x128xi32> to vector<16x128xf32>
    %c0_9 = arith.constant 0 : index
    %c0_10 = arith.constant 0 : index
    %20 = vector.load %arg4[%c0_9, %c0_10] : memref<128x128xf32, #tpu.memory_space<vmem>>, vector<128x128xf32>
    %cst_11 = arith.constant dense<0.000000e+00> : vector<16x128xf32>
    %21 = tpu.matmul %19, %20, %cst_11 {dimension_numbers = #tpu.dot_dimension_numbers<[1], [0], [0], [1], [0, 0, 1, 1], [], []>} : vector<16x128xf32>, vector<128x128xf32>, vector<16x128xf32> -> vector<16x128xf32>
    %c0_12 = arith.constant 0 : index
    %c0_13 = arith.constant 0 : index
    %22 = vector.load %arg5[%c0_12, %c0_13] : memref<1x128xf32, #tpu.memory_space<vmem>>, vector<1x128xf32>
    %23 = vector.broadcast %22 : vector<1x128xf32> to vector<16x128xf32>
    %24 = arith.addf %21, %23 : vector<16x128xf32>
    %c0_14 = arith.constant 0 : index
    %c0_15 = arith.constant 0 : index
    %25 = vector.load %arg6[%c0_14, %c0_15] : memref<16x128xf32, #tpu.memory_space<vmem>>, vector<16x128xf32>
    tpu.vector_store %arg6[%c0_14, %c0_15], %24 {strides = array<i32>} : memref<16x128xf32, #tpu.memory_space<vmem>>, vector<16x128xf32>,
    return
  }
  func.func @transform_0(%arg0: i32) -> (i32, i32) {
    %c0_i32 = arith.constant 0 : i32
    %c0_i32_0 = arith.constant 0 : i32
    return %arg0, %c0_i32 : i32, i32
  }
  func.func @transform_1(%arg0: i32) -> (i32, i32) {
    %c0_i32 = arith.constant 0 : i32
    %c0_i32_0 = arith.constant 0 : i32
    %c0_i32_1 = arith.constant 0 : i32
    return %c0_i32, %c0_i32_0 : i32, i32
  }
  func.func @transform_2(%arg0: i32) -> (i32, i32) {
    %c0_i32 = arith.constant 0 : i32
    %c0_i32_0 = arith.constant 0 : i32
    %c0_i32_1 = arith.constant 0 : i32
    return %c0_i32, %c0_i32_0 : i32, i32
  }
  func.func @transform_3(%arg0: i32) -> (i32, i32) {
    %c0_i32 = arith.constant 0 : i32
    %c0_i32_0 = arith.constant 0 : i32
    %c0_i32_1 = arith.constant 0 : i32
    return %c0_i32, %c0_i32_0 : i32, i32
  }
  func.func @transform_4(%arg0: i32) -> (i32, i32) {
    %c0_i32 = arith.constant 0 : i32
    %c0_i32_0 = arith.constant 0 : i32
    %c0_i32_1 = arith.constant 0 : i32
    return %c0_i32, %c0_i32_0 : i32, i32
  }
  func.func @transform_5(%arg0: i32) -> (i32, i32) {
    %c0_i32 = arith.constant 0 : i32
    %c0_i32_0 = arith.constant 0 : i32
    return %arg0, %c0_i32 : i32, i32
  }
  func.func @transform_6(%arg0: i32) -> (i32, i32) {
    %c0_i32 = arith.constant 0 : i32
    %c0_i32_0 = arith.constant 0 : i32
    return %arg0, %c0_i32 : i32, i32
  }
}

</mosaic_0001>

<llo_original>
// kernel: tpu_custom_call.1
$region0: #{tpu_custom_call.1}
  #allocation0 [shape = 'u32[]', space=smem, size = 0x4, offset = 0x4, fixed_abs, tag = 'smem constant byte address 0x4 - core index']
  #allocation1 [shape = 'u32[144,128]{1,0:T(1,128)}', space=vmem, size = 0x12000, scoped, tag = 'internal scratch']
  %s0 = inlined_call_operand.hbm [shape: bf16[16,128], index: 0, kind: input, shape index: {}]
  %s1 = inlined_call_operand.hbm [shape: bf16[128,128], index: 1, kind: input, shape index: {}]
  %s2 = inlined_call_operand.vmem [shape: f32[1,128], index: 2, kind: input, shape index: {}]
  %s3 = inlined_call_operand.hbm [shape: f32[128,128], index: 3, kind: input, shape index: {}]
  %s4 = inlined_call_operand.vmem [shape: f32[1,128], index: 4, kind: input, shape index: {}]
  %s5 = inlined_call_operand.hbm [shape: f32[16,128], index: 5, kind: output, shape index: {0}]
  %s6 = inlined_call_operand.vmem [shape: s32[16,1], index: 6, kind: output, shape index: {1}]
  %7 = xla_tuple %s5, %s6
  %s8 = sld [smem:[#allocation0]]
  $region50: #{tpu_custom_call.1} parent=0
    _
  %s10 = ssub.s32 1, %s8
  %s11 = scalar_select 0, %s10, %s8
  $region1: #{tpu_custom_call.1} parent=0
    #allocation2 [shape = 'u8[4096]{0}', space=vmem, size = 0x1000, scoped, tag = 'input window, operand 0, single buffered']
    #allocation3 [shape = 's32[1]{0}', space=sflag, size = 0x4, scoped, tag = 'scoped memory for tpu_custom_call.1']
    #allocation4 [shape = 's32[1]{0}', space=sflag, size = 0x4, scoped, tag = 'scoped memory for tpu_custom_call.1']
    #allocation5 [shape = 'u8[32768]{0}', space=vmem, size = 0x8000, scoped, tag = 'input window, operand 1, single buffered']
    #allocation6 [shape = 's32[1]{0}', space=sflag, size = 0x4, scoped, tag = 'scoped memory for tpu_custom_call.1']
    #allocation7 [shape = 'u8[65536]{0}', space=vmem, size = 0x10000, scoped, tag = 'input window, operand 3, single buffered']
    #allocation8 [shape = 'u8[8192]{0}', space=vmem, size = 0x2000, scoped, tag = 'output window, operand 0, single buffered']
    %12 = vsyncpa [#allocation3], 0
    %13 = vsyncpa [#allocation6], 0
    %14 = vsyncpa [#allocation4], 0
    // Predicated region
    $region2: #{tpu_custom_call.1} parent=1 // pred_check
      _
    $region3: #{tpu_custom_call.1} parent=1 // pred_check_branch
      %16 = sbr.rel (0) target = $region5
    $region4: #{tpu_custom_call.1} parent=1 // pred_region
      %s18 = ssub.s32 128, 128
      %19 = vsyncadd [#allocation3], %s18
      %s20 = sshll.u32 [#allocation2], 4
      %s21 = int_to_ptr.vmem [resolvable:$true] %s20
      %26 = dma.hbm_to_vmem [thread:$0]  %s0, 128, %s21, [#allocation3], 64, 64, 4
    $region5: #{tpu_custom_call.1} parent=1 // pred_fallthru
      _
    // Predicated region
    $region6: #{tpu_custom_call.1} parent=1 // pred_check
      _
    $region7: #{tpu_custom_call.1} parent=1 // pred_check_branch
      %28 = sbr.rel (0) target = $region9
    $region8: #{tpu_custom_call.1} parent=1 // pred_region
      %s30 = ssub.s32 1024, 1024
      %31 = vsyncadd [#allocation6], %s30
      %s32 = sshll.u32 [#allocation5], 4
      %s33 = int_to_ptr.vmem [resolvable:$true] %s32
      %38 = dma.hbm_to_vmem [thread:$0]  %s1, 1024, %s33, [#allocation6], 64, 64, 4
    $region9: #{tpu_custom_call.1} parent=1 // pred_fallthru
      _
    // Predicated region
    $region10: #{tpu_custom_call.1} parent=1 // pred_check
      _
    $region11: #{tpu_custom_call.1} parent=1 // pred_check_branch
      %40 = sbr.rel (0) target = $region13
    $region12: #{tpu_custom_call.1} parent=1 // pred_region
      _
    $region13: #{tpu_custom_call.1} parent=1 // pred_fallthru
      _
    // Predicated region
    $region14: #{tpu_custom_call.1} parent=1 // pred_check
      _
    $region15: #{tpu_custom_call.1} parent=1 // pred_check_branch
      %42 = sbr.rel (0) target = $region17
    $region16: #{tpu_custom_call.1} parent=1 // pred_region
      %s44 = ssub.s32 2048, 2048
      %45 = vsyncadd [#allocation6], %s44
      %s46 = sshll.u32 [#allocation7], 4
      %s47 = int_to_ptr.vmem [resolvable:$true] %s46
      %52 = dma.hbm_to_vmem [thread:$0]  %s3, 2048, %s47, [#allocation6], 128, 128, 8
    $region17: #{tpu_custom_call.1} parent=1 // pred_fallthru
      _
    // Predicated region
    $region18: #{tpu_custom_call.1} parent=1 // pred_check
      _
    $region19: #{tpu_custom_call.1} parent=1 // pred_check_branch
      %54 = sbr.rel (0) target = $region21
    $region20: #{tpu_custom_call.1} parent=1 // pred_region
      _
    $region21: #{tpu_custom_call.1} parent=1 // pred_fallthru
      _
    // Predicated region
    $region22: #{tpu_custom_call.1} parent=1 // pred_check
      _
    $region23: #{tpu_custom_call.1} parent=1 // pred_check_branch
      %56 = sbr.rel (0) target = $region25
    $region24: #{tpu_custom_call.1} parent=1 // pred_region
      %57 = dma.done [#allocation3], 128
    $region25: #{tpu_custom_call.1} parent=1 // pred_fallthru
      _
    // Predicated region
    $region26: #{tpu_custom_call.1} parent=1 // pred_check
      _
    $region27: #{tpu_custom_call.1} parent=1 // pred_check_branch
      %59 = sbr.rel (0) target = $region29
    $region28: #{tpu_custom_call.1} parent=1 // pred_region
      %60 = dma.done [#allocation6], 1024
    $region29: #{tpu_custom_call.1} parent=1 // pred_fallthru
      _
    // Predicated region
    $region30: #{tpu_custom_call.1} parent=1 // pred_check
      _
    $region31: #{tpu_custom_call.1} parent=1 // pred_check_branch
      %62 = sbr.rel (0) target = $region33
    $region32: #{tpu_custom_call.1} parent=1 // pred_region
      %63 = dma.done [#allocation6], 2048
    $region33: #{tpu_custom_call.1} parent=1 // pred_fallthru
      _
    %v65 = vld [vmem:[#allocation2] sm:$0xf]
    %v66 = vld [vmem:[#allocation2 + $0x4] sm:$0xf]
    %v67 = vld [vmem:[#allocation5] sm:$0xf]
    %v68 = vld [vmem:[#allocation5 + $0x4] sm:$0xf]
    %v69 = vld [vmem:[#allocation5 + $0x8] sm:$0xf]
    %v70 = vld [vmem:[#allocation5 + $0xc] sm:$0xf]
    %v71 = vld [vmem:[#allocation5 + $0x10] sm:$0xf]
    %v72 = vld [vmem:[#allocation5 + $0x14] sm:$0xf]
    %v73 = vld [vmem:[#allocation5 + $0x18] sm:$0xf]
    %v74 = vld [vmem:[#allocation5 + $0x1c] sm:$0xf]
    %v75 = vld [vmem:[#allocation5 + $0x20] sm:$0xf]
    %v76 = vld [vmem:[#allocation5 + $0x24] sm:$0xf]
    %v77 = vld [vmem:[#allocation5 + $0x28] sm:$0xf]
    %v78 = vld [vmem:[#allocation5 + $0x2c] sm:$0xf]
    %v79 = vld [vmem:[#allocation5 + $0x30] sm:$0xf]
    %v80 = vld [vmem:[#allocation5 + $0x34] sm:$0xf]
    %v81 = vld [vmem:[#allocation5 + $0x38] sm:$0xf]
    %v82 = vld [vmem:[#allocation5 + $0x3c] sm:$0xf]
    %v83 = vld [vmem:[%s2] sm:$0x1]
    %v85 = vlaneseq
    %v86 = vshrl.u32 %v85, 7
    %v87 = vsub.s32 0, %v86
    %v88 = vrot.slane %v83, %v87
    %v92 = vunpack.c.l.b16 %v65
    %v93 = vunpack.c.l.b16 %v66
    %v94 = vpack.c.b16 %v93, %v92
    %v112 = vunpack.c.l.b16 %v67
    %v113 = vunpack.c.l.b16 %v68
    %v114 = vunpack.c.l.b16 %v69
    %v115 = vunpack.c.l.b16 %v70
    %v116 = vunpack.c.l.b16 %v71
    %v117 = vunpack.c.l.b16 %v72
    %v118 = vunpack.c.l.b16 %v73
    %v119 = vunpack.c.l.b16 %v74
    %v120 = vunpack.c.l.b16 %v75
    %v121 = vunpack.c.l.b16 %v76
    %v122 = vunpack.c.l.b16 %v77
    %v123 = vunpack.c.l.b16 %v78
    %v124 = vunpack.c.l.b16 %v79
    %v125 = vunpack.c.l.b16 %v80
    %v126 = vunpack.c.l.b16 %v81
    %v127 = vunpack.c.l.b16 %v82
    %v128 = vpack.c.b16 %v113, %v112
    %v129 = vpack.c.b16 %v115, %v114
    %v130 = vpack.c.b16 %v117, %v116
    %v131 = vpack.c.b16 %v119, %v118
    %v132 = vpack.c.b16 %v121, %v120
    %v133 = vpack.c.b16 %v123, %v122
    %v134 = vpack.c.b16 %v125, %v124
    %v135 = vpack.c.b16 %v127, %v126
    %144 = vmatprep.subr.bf16.mxu0 0
    %145 = vmatpush1.bf16.msra.mxu0 %v128
    %146 = vmatprep.subr.bf16.mxu0 0
    %147 = vmatpush1.bf16.msra.mxu0 %v129
    %148 = vmatprep.subr.bf16.mxu0 0
    %149 = vmatpush1.bf16.msra.mxu0 %v130
    %150 = vmatprep.subr.bf16.mxu0 0
    %151 = vmatpush1.bf16.msra.mxu0 %v131
    %152 = vmatprep.subr.bf16.mxu0 0
    %153 = vmatpush1.bf16.msra.mxu0 %v132
    %154 = vmatprep.subr.bf16.mxu0 0
    %155 = vmatpush1.bf16.msra.mxu0 %v133
    %156 = vmatprep.subr.bf16.mxu0 0
    %157 = vmatpush1.bf16.msra.mxu0 %v134
    %158 = vmatprep.subr.bf16.mxu0 0
    %159 = vmatpush1.bf16.msra.mxu0 %v135
    %160 = vmatprep.subr.bf16.mxu0 0
    %161 = vmatpush1.bf16.msra.mxu0 0
    %162 = vmatprep.subr.bf16.mxu0 0
    %163 = vmatpush1.bf16.msra.mxu0 0
    %164 = vmatprep.subr.bf16.mxu0 0
    %165 = vmatpush1.bf16.msra.mxu0 0
    %166 = vmatprep.subr.bf16.mxu0 0
    %167 = vmatpush1.bf16.msra.mxu0 0
    %168 = vmatprep.subr.bf16.mxu0 0
    %169 = vmatpush1.bf16.msra.mxu0 0
    %170 = vmatprep.subr.bf16.mxu0 0
    %171 = vmatpush1.bf16.msra.mxu0 0
    %172 = vmatprep.subr.bf16.mxu0 0
    %173 = vmatpush1.bf16.msra.mxu0 0
    %174 = vmatprep.subr.bf16.mxu0 0
    %175 = vmatpush1.bf16.msra.mxu0 0
    %176 = vmatprep.mubr.bf16.mxu0 0
    %177 = vmatmul.mubr.bf16.gmra.mrb[0].mxu0 %v94
    %v178 = vpop.f32.mrb[0].mxu0
    %v179 = vadd.f32 %v88, %v178
    %v180 = vpop.f32.mrb[0].mxu0
    %v181 = vpop.f32.mrb[0].mxu0
    %v182 = vadd.f32 %v88, %v181
    %v183 = vpop.f32.mrb[0].mxu0
    %184 = vdwg.mxu0
    %v185 = vlaneseq
    %v186 = vand.u32 %v185, 127
    %187 = vmin.xlane.f32.xlu0 %v179
    %v188 = vpop.xlane.xlu0 %187
    %189 = vmin.xlane.f32.xlu0 %v182
    %v190 = vpop.xlane.xlu0 %189
    %vm191 = vcmp.eq.f32.partialorder %v179, %v188
    %vm192 = vcmp.eq.f32.partialorder %v182, %v190
    %v193 = vsel %vm191, %v186, 128
    %v194 = vsel %vm192, %v186, 128
    %v195 = vand.u32 %v193, 65535
    %v196 = vshra.s32 %v193, 16
    %v197 = vcvt.s32.f32 %v195
    %v198 = vcvt.s32.f32 %v196
    %199 = vmin.xlane.f32.xlu0 %v198
    %v200 = vpop.xlane.xlu0 %199
    %vm201 = vcmp.eq.f32.partialorder %v198, %v200
    %v202 = vsel %vm201, %v197, inf
    %203 = vmin.xlane.f32.xlu0 %v202
    %v204 = vpop.xlane.xlu0 %203
    %v205 = vcvt.f32.s32 %v204
    %v206 = vcvt.f32.s32 %v200
    %v207 = vshll.u32 %v206, 16
    %v208 = vadd.s32 %v207, %v205
    %v209 = vand.u32 %v194, 65535
    %v210 = vshra.s32 %v194, 16
    %v211 = vcvt.s32.f32 %v209
    %v212 = vcvt.s32.f32 %v210
    %213 = vmin.xlane.f32.xlu0 %v212
    %v214 = vpop.xlane.xlu0 %213
    %vm215 = vcmp.eq.f32.partialorder %v212, %v214
    %v216 = vsel %vm215, %v211, inf
    %217 = vmin.xlane.f32.xlu0 %v216
    %v218 = vpop.xlane.xlu0 %217
    %v219 = vcvt.f32.s32 %v218
    %v220 = vcvt.f32.s32 %v214
    %v221 = vshll.u32 %v220, 16
    %v222 = vadd.s32 %v221, %v219
    %vm223 = vcmask 7168
    %224 = vst.msk [vmem:[%s6] sm:$0xff] %vm223, %v208
    %225 = vst.msk [vmem:[%s6 + $0x8] sm:$0xff] %vm223, %v222
    %vm226 = vcmp.eq.s32.totalorder %v186, %v208
    %vm227 = vcmp.eq.s32.totalorder %v186, %v222
    %v228 = vsel %vm226, 1, 0
    %v229 = vsel %vm227, 1, 0
    %v230 = vcvt.s32.f32 %v228
    %v231 = vcvt.s32.f32 %v229
    %v232 = vld [vmem:[#allocation7] sm:$0xff]
    %v233 = vld [vmem:[#allocation7 + $0x8] sm:$0xff]
    %v234 = vld [vmem:[#allocation7 + $0x10] sm:$0xff]
    %v235 = vld [vmem:[#allocation7 + $0x18] sm:$0xff]
    %v236 = vld [vmem:[#allocation7 + $0x20] sm:$0xff]
    %v237 = vld [vmem:[#allocation7 + $0x28] sm:$0xff]
    %v238 = vld [vmem:[#allocation7 + $0x30] sm:$0xff]
    %v239 = vld [vmem:[#allocation7 + $0x38] sm:$0xff]
    %v240 = vld [vmem:[#allocation7 + $0x40] sm:$0xff]
    %v241 = vld [vmem:[#allocation7 + $0x48] sm:$0xff]
    %v242 = vld [vmem:[#allocation7 + $0x50] sm:$0xff]
    %v243 = vld [vmem:[#allocation7 + $0x58] sm:$0xff]
    %v244 = vld [vmem:[#allocation7 + $0x60] sm:$0xff]
    %v245 = vld [vmem:[#allocation7 + $0x68] sm:$0xff]
    %v246 = vld [vmem:[#allocation7 + $0x70] sm:$0xff]
    %v247 = vld [vmem:[#allocation7 + $0x78] sm:$0xff]
    %v248 = vld [vmem:[%s4] sm:$0x1]
    %v250 = vlaneseq
    %v251 = vshrl.u32 %v250, 7
    %v252 = vsub.s32 0, %v251
    %v253 = vrot.slane %v248, %v252
    %255 = vmatprep.subr.mxu0 0.0
    %256 = vmatpush1.msra.mxu0 %v232
    %257 = vmatprep.subr.mxu0 0.0
    %258 = vmatpush1.msra.mxu0 %v233
    %259 = vmatprep.subr.mxu0 0.0
    %260 = vmatpush1.msra.mxu0 %v234
    %261 = vmatprep.subr.mxu0 0.0
    %262 = vmatpush1.msra.mxu0 %v235
    %263 = vmatprep.subr.mxu0 0.0
    %264 = vmatpush1.msra.mxu0 %v236
    %265 = vmatprep.subr.mxu0 0.0
    %266 = vmatpush1.msra.mxu0 %v237
    %267 = vmatprep.subr.mxu0 0.0
    %268 = vmatpush1.msra.mxu0 %v238
    %269 = vmatprep.subr.mxu0 0.0
    %270 = vmatpush1.msra.mxu0 %v239
    %271 = vmatprep.subr.mxu0 0.0
    %272 = vmatpush1.msra.mxu0 %v240
    %273 = vmatprep.subr.mxu0 0.0
    %274 = vmatpush1.msra.mxu0 %v241
    %275 = vmatprep.subr.mxu0 0.0
    %276 = vmatpush1.msra.mxu0 %v242
    %277 = vmatprep.subr.mxu0 0.0
    %278 = vmatpush1.msra.mxu0 %v243
    %279 = vmatprep.subr.mxu0 0.0
    %280 = vmatpush1.msra.mxu0 %v244
    %281 = vmatprep.subr.mxu0 0.0
    %282 = vmatpush1.msra.mxu0 %v245
    %283 = vmatprep.subr.mxu0 0.0
    %284 = vmatpush1.msra.mxu0 %v246
    %285 = vmatprep.subr.mxu0 0.0
    %286 = vmatpush1.msra.mxu0 %v247
    %287 = vmatprep.subr.mxu0 0.0
    %288 = vmatpush1.msra.mxu0 0.0
    %289 = vmatprep.subr.mxu0 0.0
    %290 = vmatpush1.msra.mxu0 0.0
    %291 = vmatprep.subr.mxu0 0.0
    %292 = vmatpush1.msra.mxu0 0.0
    %293 = vmatprep.subr.mxu0 0.0
    %294 = vmatpush1.msra.mxu0 0.0
    %295 = vmatprep.subr.mxu0 0.0
    %296 = vmatpush1.msra.mxu0 0.0
    %297 = vmatprep.subr.mxu0 0.0
    %298 = vmatpush1.msra.mxu0 0.0
    %299 = vmatprep.subr.mxu0 0.0
    %300 = vmatpush1.msra.mxu0 0.0
    %301 = vmatprep.subr.mxu0 0.0
    %302 = vmatpush1.msra.mxu0 0.0
    %303 = vmatprep.subr.mxu0 0.0
    %304 = vmatpush1.msra.mxu0 0.0
    %305 = vmatprep.subr.mxu0 0.0
    %306 = vmatpush1.msra.mxu0 0.0
    %307 = vmatprep.subr.mxu0 0.0
    %308 = vmatpush1.msra.mxu0 0.0
    %309 = vmatprep.subr.mxu0 0.0
    %310 = vmatpush1.msra.mxu0 0.0
    %311 = vmatprep.subr.mxu0 0.0
    %312 = vmatpush1.msra.mxu0 0.0
    %313 = vmatprep.subr.mxu0 0.0
    %314 = vmatpush1.msra.mxu0 0.0
    %315 = vmatprep.subr.mxu0 0.0
    %316 = vmatpush1.msra.mxu0 0.0
    %317 = vmatprep.subr.mxu0 0.0
    %318 = vmatpush1.msra.mxu0 0.0
    %319 = vmatprep.mubr.f32.mxu0 0.0
    %320 = vmatmul.mubr.f32.gmra.mrb[0].mxu0 %v230
    %v321 = vpop.f32.mrb[0].mxu0
    %v322 = vadd.f32 %v253, %v321
    %v323 = vpop.f32.mrb[0].mxu0
    %324 = vmatprep.mubr.f32.mxu0 0.0
    %325 = vmatmul.mubr.f32.gmra.mrb[0].mxu0 %v231
    %v326 = vpop.f32.mrb[0].mxu0
    %v327 = vadd.f32 %v253, %v326
    %v328 = vpop.f32.mrb[0].mxu0
    %329 = vdwg.mxu0
    %330 = vst [vmem:[#allocation8] sm:$0xff] %v322
    %331 = vst [vmem:[#allocation8 + $0x8] sm:$0xff] %v327
    // Predicated region
    $region34: #{tpu_custom_call.1} parent=1 // pred_check
      _
    $region35: #{tpu_custom_call.1} parent=1 // pred_check_branch
      %333 = sbr.rel (0) target = $region37
    $region36: #{tpu_custom_call.1} parent=1 // pred_region
      %s335 = ssub.s32 256, 256
      %336 = vsyncadd [#allocation4], %s335
      %s337 = sshll.u32 [#allocation8], 4
      %s338 = int_to_ptr.vmem [resolvable:$true] %s337
      %343 = dma.vmem_to_hbm [thread:$0]  %s338, 256, %s5, [#allocation4], 128, 128, 8
    $region37: #{tpu_custom_call.1} parent=1 // pred_fallthru
      _
    // Predicated region
    $region38: #{tpu_custom_call.1} parent=1 // pred_check
      _
    $region39: #{tpu_custom_call.1} parent=1 // pred_check_branch
      %345 = sbr.rel (0) target = $region41
    $region40: #{tpu_custom_call.1} parent=1 // pred_region
      _
    $region41: #{tpu_custom_call.1} parent=1 // pred_fallthru
      _
    // Predicated region
    $region42: #{tpu_custom_call.1} parent=1 // pred_check
      _
    $region43: #{tpu_custom_call.1} parent=1 // pred_check_branch
      %347 = sbr.rel (0) target = $region45
    $region44: #{tpu_custom_call.1} parent=1 // pred_region
      %348 = dma.done [#allocation4], 256
    $region45: #{tpu_custom_call.1} parent=1 // pred_fallthru
      _
    // Predicated region
    $region46: #{tpu_custom_call.1} parent=1 // pred_check
      _
    $region47: #{tpu_custom_call.1} parent=1 // pred_check_branch
      %350 = sbr.rel (0) target = $region49
    $region48: #{tpu_custom_call.1} parent=1 // pred_region
      _
    $region49: #{tpu_custom_call.1} parent=1 // pred_fallthru
      _
    %351 = vsyncpa [#allocation3], 1
    %352 = vsyncpa [#allocation6], 1
    %353 = vsyncpa [#allocation4], 1

// kernel: tpu_custom_call.1
$region0: #{tpu_custom_call.1}
  #allocation0 [shape = 'u32[]', space=smem, size = 0x4, offset = 0x4, fixed_abs, tag = 'smem constant byte address 0x4 - core index']
  #allocation1 [shape = 'u32[144,128]{1,0:T(1,128)}', space=vmem, size = 0x12000, scoped, tag = 'internal scratch']
  %s0 = inlined_call_operand.hbm [shape: bf16[16,128], index: 0, kind: input, shape index: {}]
  %s1 = inlined_call_operand.hbm [shape: bf16[128,128], index: 1, kind: input, shape index: {}]
  %s2 = inlined_call_operand.vmem [shape: f32[1,128], index: 2, kind: input, shape index: {}]
  %s3 = inlined_call_operand.hbm [shape: f32[128,128], index: 3, kind: input, shape index: {}]
  %s4 = inlined_call_operand.vmem [shape: f32[1,128], index: 4, kind: input, shape index: {}]
  %s5 = inlined_call_operand.hbm [shape: f32[16,128], index: 5, kind: output, shape index: {0}]
  %s6 = inlined_call_operand.vmem [shape: s32[16,1], index: 6, kind: output, shape index: {1}]
  %7 = xla_tuple %s5, %s6
  %s8 = sld [smem:[#allocation0]]
  $region50: #{tpu_custom_call.1} parent=0
    _
  %s10 = ssub.s32 1, %s8
  %s11 = scalar_select 0, %s10, %s8
  $region1: #{tpu_custom_call.1} parent=0
    #allocation2 [shape = 'u8[4096]{0}', space=vmem, size = 0x1000, scoped, tag = 'input window, operand 0, single buffered']
    #allocation3 [shape = 's32[1]{0}', space=sflag, size = 0x4, scoped, tag = 'scoped memory for tpu_custom_call.1']
    #allocation4 [shape = 's32[1]{0}', space=sflag, size = 0x4, scoped, tag = 'scoped memory for tpu_custom_call.1']
    #allocation5 [shape = 'u8[32768]{0}', space=vmem, size = 0x8000, scoped, tag = 'input window, operand 1, single buffered']
    #allocation6 [shape = 's32[1]{0}', space=sflag, size = 0x4, scoped, tag = 'scoped memory for tpu_custom_call.1']
    #allocation7 [shape = 'u8[65536]{0}', space=vmem, size = 0x10000, scoped, tag = 'input window, operand 3, single buffered']
    #allocation8 [shape = 'u8[8192]{0}', space=vmem, size = 0x2000, scoped, tag = 'output window, operand 0, single buffered']
    %12 = vsyncpa [#allocation3], 0
    %13 = vsyncpa [#allocation6], 0
    %14 = vsyncpa [#allocation4], 0
    // Predicated region
    $region2: #{tpu_custom_call.1} parent=1 // pred_check
      _
    $region3: #{tpu_custom_call.1} parent=1 // pred_check_branch
      %16 = sbr.rel (0) target = $region5
    $region4: #{tpu_custom_call.1} parent=1 // pred_region
      %s18 = ssub.s32 128, 128
      %19 = vsyncadd [#allocation3], %s18
      %s20 = sshll.u32 [#allocation2], 4
      %s21 = int_to_ptr.vmem [resolvable:$true] %s20
      %26 = dma.hbm_to_vmem [thread:$0]  %s0, 128, %s21, [#allocation3], 64, 64, 4
    $region5: #{tpu_custom_call.1} parent=1 // pred_fallthru
      _
    // Predicated region
    $region6: #{tpu_custom_call.1} parent=1 // pred_check
      _
    $region7: #{tpu_custom_call.1} parent=1 // pred_check_branch
      %28 = sbr.rel (0) target = $region9
    $region8: #{tpu_custom_call.1} parent=1 // pred_region
      %s30 = ssub.s32 1024, 1024
      %31 = vsyncadd [#allocation6], %s30
      %s32 = sshll.u32 [#allocation5], 4
      %s33 = int_to_ptr.vmem [resolvable:$true] %s32
      %38 = dma.hbm_to_vmem [thread:$0]  %s1, 1024, %s33, [#allocation6], 64, 64, 4
    $region9: #{tpu_custom_call.1} parent=1 // pred_fallthru
      _
    // Predicated region
    $region10: #{tpu_custom_call.1} parent=1 // pred_check
      _
    $region11: #{tpu_custom_call.1} parent=1 // pred_check_branch
      %40 = sbr.rel (0) target = $region13
    $region12: #{tpu_custom_call.1} parent=1 // pred_region
      _
    $region13: #{tpu_custom_call.1} parent=1 // pred_fallthru
      _
    // Predicated region
    $region14: #{tpu_custom_call.1} parent=1 // pred_check
      _
    $region15: #{tpu_custom_call.1} parent=1 // pred_check_branch
      %42 = sbr.rel (0) target = $region17
    $region16: #{tpu_custom_call.1} parent=1 // pred_region
      %s44 = ssub.s32 2048, 2048
      %45 = vsyncadd [#allocation6], %s44
      %s46 = sshll.u32 [#allocation7], 4
      %s47 = int_to_ptr.vmem [resolvable:$true] %s46
      %52 = dma.hbm_to_vmem [thread:$0]  %s3, 2048, %s47, [#allocation6], 128, 128, 8
    $region17: #{tpu_custom_call.1} parent=1 // pred_fallthru
      _
    // Predicated region
    $region18: #{tpu_custom_call.1} parent=1 // pred_check
      _
    $region19: #{tpu_custom_call.1} parent=1 // pred_check_branch
      %54 = sbr.rel (0) target = $region21
    $region20: #{tpu_custom_call.1} parent=1 // pred_region
      _
    $region21: #{tpu_custom_call.1} parent=1 // pred_fallthru
      _
    // Predicated region
    $region22: #{tpu_custom_call.1} parent=1 // pred_check
      _
    $region23: #{tpu_custom_call.1} parent=1 // pred_check_branch
      %56 = sbr.rel (0) target = $region25
    $region24: #{tpu_custom_call.1} parent=1 // pred_region
      %57 = dma.done [#allocation3], 128
    $region25: #{tpu_custom_call.1} parent=1 // pred_fallthru
      _
    // Predicated region
    $region26: #{tpu_custom_call.1} parent=1 // pred_check
      _
    $region27: #{tpu_custom_call.1} parent=1 // pred_check_branch
      %59 = sbr.rel (0) target = $region29
    $region28: #{tpu_custom_call.1} parent=1 // pred_region
      %60 = dma.done [#allocation6], 1024
    $region29: #{tpu_custom_call.1} parent=1 // pred_fallthru
      _
    // Predicated region
    $region30: #{tpu_custom_call.1} parent=1 // pred_check
      _
    $region31: #{tpu_custom_call.1} parent=1 // pred_check_branch
      %62 = sbr.rel (0) target = $region33
    $region32: #{tpu_custom_call.1} parent=1 // pred_region
      %63 = dma.done [#allocation6], 2048
    $region33: #{tpu_custom_call.1} parent=1 // pred_fallthru
      _
    %v65 = vld [vmem:[#allocation2] sm:$0xf]
    %v66 = vld [vmem:[#allocation2 + $0x4] sm:$0xf]
    %v67 = vld [vmem:[#allocation5] sm:$0xf]
    %v68 = vld [vmem:[#allocation5 + $0x4] sm:$0xf]
    %v69 = vld [vmem:[#allocation5 + $0x8] sm:$0xf]
    %v70 = vld [vmem:[#allocation5 + $0xc] sm:$0xf]
    %v71 = vld [vmem:[#allocation5 + $0x10] sm:$0xf]
    %v72 = vld [vmem:[#allocation5 + $0x14] sm:$0xf]
    %v73 = vld [vmem:[#allocation5 + $0x18] sm:$0xf]
    %v74 = vld [vmem:[#allocation5 + $0x1c] sm:$0xf]
    %v75 = vld [vmem:[#allocation5 + $0x20] sm:$0xf]
    %v76 = vld [vmem:[#allocation5 + $0x24] sm:$0xf]
    %v77 = vld [vmem:[#allocation5 + $0x28] sm:$0xf]
    %v78 = vld [vmem:[#allocation5 + $0x2c] sm:$0xf]
    %v79 = vld [vmem:[#allocation5 + $0x30] sm:$0xf]
    %v80 = vld [vmem:[#allocation5 + $0x34] sm:$0xf]
    %v81 = vld [vmem:[#allocation5 + $0x38] sm:$0xf]
    %v82 = vld [vmem:[#allocation5 + $0x3c] sm:$0xf]
    %v83 = vld [vmem:[%s2] sm:$0x1]
    %v85 = vlaneseq
    %v86 = vshrl.u32 %v85, 7
    %v87 = vsub.s32 0, %v86
    %v88 = vrot.slane %v83, %v87
    %v92 = vunpack.c.l.b16 %v65
    %v93 = vunpack.c.l.b16 %v66
    %v94 = vpack.c.b16 %v93, %v92
    %v112 = vunpack.c.l.b16 %v67
    %v113 = vunpack.c.l.b16 %v68
    %v114 = vunpack.c.l.b16 %v69
    %v115 = vunpack.c.l.b16 %v70
    %v116 = vunpack.c.l.b16 %v71
    %v117 = vunpack.c.l.b16 %v72
    %v118 = vunpack.c.l.b16 %v73
    %v119 = vunpack.c.l.b16 %v74
    %v120 = vunpack.c.l.b16 %v75
    %v121 = vunpack.c.l.b16 %v76
    %v122 = vunpack.c.l.b16 %v77
    %v123 = vunpack.c.l.b16 %v78
    %v124 = vunpack.c.l.b16 %v79
    %v125 = vunpack.c.l.b16 %v80
    %v126 = vunpack.c.l.b16 %v81
    %v127 = vunpack.c.l.b16 %v82
    %v128 = vpack.c.b16 %v113, %v112
    %v129 = vpack.c.b16 %v115, %v114
    %v130 = vpack.c.b16 %v117, %v116
    %v131 = vpack.c.b16 %v119, %v118
    %v132 = vpack.c.b16 %v121, %v120
    %v133 = vpack.c.b16 %v123, %v122
    %v134 = vpack.c.b16 %v125, %v124
    %v135 = vpack.c.b16 %v127, %v126
    %144 = vmatprep.subr.bf16.mxu0 0
    %145 = vmatpush1.bf16.msra.mxu0 %v128
    %146 = vmatprep.subr.bf16.mxu0 0
    %147 = vmatpush1.bf16.msra.mxu0 %v129
    %148 = vmatprep.subr.bf16.mxu0 0
    %149 = vmatpush1.bf16.msra.mxu0 %v130
    %150 = vmatprep.subr.bf16.mxu0 0
    %151 = vmatpush1.bf16.msra.mxu0 %v131
    %152 = vmatprep.subr.bf16.mxu0 0
    %153 = vmatpush1.bf16.msra.mxu0 %v132
    %154 = vmatprep.subr.bf16.mxu0 0
    %155 = vmatpush1.bf16.msra.mxu0 %v133
    %156 = vmatprep.subr.bf16.mxu0 0
    %157 = vmatpush1.bf16.msra.mxu0 %v134
    %158 = vmatprep.subr.bf16.mxu0 0
    %159 = vmatpush1.bf16.msra.mxu0 %v135
    %160 = vmatprep.subr.bf16.mxu0 0
    %161 = vmatpush1.bf16.msra.mxu0 0
    %162 = vmatprep.subr.bf16.mxu0 0
    %163 = vmatpush1.bf16.msra.mxu0 0
    %164 = vmatprep.subr.bf16.mxu0 0
    %165 = vmatpush1.bf16.msra.mxu0 0
    %166 = vmatprep.subr.bf16.mxu0 0
    %167 = vmatpush1.bf16.msra.mxu0 0
    %168 = vmatprep.subr.bf16.mxu0 0
    %169 = vmatpush1.bf16.msra.mxu0 0
    %170 = vmatprep.subr.bf16.mxu0 0
    %171 = vmatpush1.bf16.msra.mxu0 0
    %172 = vmatprep.subr.bf16.mxu0 0
    %173 = vmatpush1.bf16.msra.mxu0 0
    %174 = vmatprep.subr.bf16.mxu0 0
    %175 = vmatpush1.bf16.msra.mxu0 0
    %176 = vmatprep.mubr.bf16.mxu0 0
    %177 = vmatmul.mubr.bf16.gmra.mrb[0].mxu0 %v94
    %v178 = vpop.f32.mrb[0].mxu0
    %v179 = vadd.f32 %v88, %v178
    %v180 = vpop.f32.mrb[0].mxu0
    %v181 = vpop.f32.mrb[0].mxu0
    %v182 = vadd.f32 %v88, %v181
    %v183 = vpop.f32.mrb[0].mxu0
    %184 = vdwg.mxu0
    %v185 = vlaneseq
    %v186 = vand.u32 %v185, 127
    %187 = vmin.xlane.f32.xlu0 %v179
    %v188 = vpop.xlane.xlu0 %187
    %189 = vmin.xlane.f32.xlu0 %v182
    %v190 = vpop.xlane.xlu0 %189
    %vm191 = vcmp.eq.f32.partialorder %v179, %v188
    %vm192 = vcmp.eq.f32.partialorder %v182, %v190
    %v193 = vsel %vm191, %v186, 128
    %v194 = vsel %vm192, %v186, 128
    %v195 = vand.u32 %v193, 65535
    %v196 = vshra.s32 %v193, 16
    %v197 = vcvt.s32.f32 %v195
    %v198 = vcvt.s32.f32 %v196
    %199 = vmin.xlane.f32.xlu0 %v198
    %v200 = vpop.xlane.xlu0 %199
    %vm201 = vcmp.eq.f32.partialorder %v198, %v200
    %v202 = vsel %vm201, %v197, inf
    %203 = vmin.xlane.f32.xlu0 %v202
    %v204 = vpop.xlane.xlu0 %203
    %v205 = vcvt.f32.s32 %v204
    %v206 = vcvt.f32.s32 %v200
    %v207 = vshll.u32 %v206, 16
    %v208 = vadd.s32 %v207, %v205
    %v209 = vand.u32 %v194, 65535
    %v210 = vshra.s32 %v194, 16
    %v211 = vcvt.s32.f32 %v209
    %v212 = vcvt.s32.f32 %v210
    %213 = vmin.xlane.f32.xlu0 %v212
    %v214 = vpop.xlane.xlu0 %213
    %vm215 = vcmp.eq.f32.partialorder %v212, %v214
    %v216 = vsel %vm215, %v211, inf
    %217 = vmin.xlane.f32.xlu0 %v216
    %v218 = vpop.xlane.xlu0 %217
    %v219 = vcvt.f32.s32 %v218
    %v220 = vcvt.f32.s32 %v214
    %v221 = vshll.u32 %v220, 16
    %v222 = vadd.s32 %v221, %v219
    %vm223 = vcmask 7168
    %224 = vst.msk [vmem:[%s6] sm:$0xff] %vm223, %v208
    %225 = vst.msk [vmem:[%s6 + $0x8] sm:$0xff] %vm223, %v222
    %vm226 = vcmp.eq.s32.totalorder %v186, %v208
    %vm227 = vcmp.eq.s32.totalorder %v186, %v222
    %v228 = vsel %vm226, 1, 0
    %v229 = vsel %vm227, 1, 0
    %v230 = vcvt.s32.f32 %v228
    %v231 = vcvt.s32.f32 %v229
    %v232 = vld [vmem:[#allocation7] sm:$0xff]
    %v233 = vld [vmem:[#allocation7 + $0x8] sm:$0xff]
    %v234 = vld [vmem:[#allocation7 + $0x10] sm:$0xff]
    %v235 = vld [vmem:[#allocation7 + $0x18] sm:$0xff]
    %v236 = vld [vmem:[#allocation7 + $0x20] sm:$0xff]
    %v237 = vld [vmem:[#allocation7 + $0x28] sm:$0xff]
    %v238 = vld [vmem:[#allocation7 + $0x30] sm:$0xff]
    %v239 = vld [vmem:[#allocation7 + $0x38] sm:$0xff]
    %v240 = vld [vmem:[#allocation7 + $0x40] sm:$0xff]
    %v241 = vld [vmem:[#allocation7 + $0x48] sm:$0xff]
    %v242 = vld [vmem:[#allocation7 + $0x50] sm:$0xff]
    %v243 = vld [vmem:[#allocation7 + $0x58] sm:$0xff]
    %v244 = vld [vmem:[#allocation7 + $0x60] sm:$0xff]
    %v245 = vld [vmem:[#allocation7 + $0x68] sm:$0xff]
    %v246 = vld [vmem:[#allocation7 + $0x70] sm:$0xff]
    %v247 = vld [vmem:[#allocation7 + $0x78] sm:$0xff]
    %v248 = vld [vmem:[%s4] sm:$0x1]
    %v250 = vlaneseq
    %v251 = vshrl.u32 %v250, 7
    %v252 = vsub.s32 0, %v251
    %v253 = vrot.slane %v248, %v252
    %255 = vmatprep.subr.mxu0 0.0
    %256 = vmatpush1.msra.mxu0 %v232
    %257 = vmatprep.subr.mxu0 0.0
    %258 = vmatpush1.msra.mxu0 %v233
    %259 = vmatprep.subr.mxu0 0.0
    %260 = vmatpush1.msra.mxu0 %v234
    %261 = vmatprep.subr.mxu0 0.0
    %262 = vmatpush1.msra.mxu0 %v235
    %263 = vmatprep.subr.mxu0 0.0
    %264 = vmatpush1.msra.mxu0 %v236
    %265 = vmatprep.subr.mxu0 0.0
    %266 = vmatpush1.msra.mxu0 %v237
    %267 = vmatprep.subr.mxu0 0.0
    %268 = vmatpush1.msra.mxu0 %v238
    %269 = vmatprep.subr.mxu0 0.0
    %270 = vmatpush1.msra.mxu0 %v239
    %271 = vmatprep.subr.mxu0 0.0
    %272 = vmatpush1.msra.mxu0 %v240
    %273 = vmatprep.subr.mxu0 0.0
    %274 = vmatpush1.msra.mxu0 %v241
    %275 = vmatprep.subr.mxu0 0.0
    %276 = vmatpush1.msra.mxu0 %v242
    %277 = vmatprep.subr.mxu0 0.0
    %278 = vmatpush1.msra.mxu0 %v243
    %279 = vmatprep.subr.mxu0 0.0
    %280 = vmatpush1.msra.mxu0 %v244
    %281 = vmatprep.subr.mxu0 0.0
    %282 = vmatpush1.msra.mxu0 %v245
    %283 = vmatprep.subr.mxu0 0.0
    %284 = vmatpush1.msra.mxu0 %v246
    %285 = vmatprep.subr.mxu0 0.0
    %286 = vmatpush1.msra.mxu0 %v247
    %287 = vmatprep.subr.mxu0 0.0
    %288 = vmatpush1.msra.mxu0 0.0
    %289 = vmatprep.subr.mxu0 0.0
    %290 = vmatpush1.msra.mxu0 0.0
    %291 = vmatprep.subr.mxu0 0.0
    %292 = vmatpush1.msra.mxu0 0.0
    %293 = vmatprep.subr.mxu0 0.0
    %294 = vmatpush1.msra.mxu0 0.0
    %295 = vmatprep.subr.mxu0 0.0
    %296 = vmatpush1.msra.mxu0 0.0
    %297 = vmatprep.subr.mxu0 0.0
    %298 = vmatpush1.msra.mxu0 0.0
    %299 = vmatprep.subr.mxu0 0.0
    %300 = vmatpush1.msra.mxu0 0.0
    %301 = vmatprep.subr.mxu0 0.0
    %302 = vmatpush1.msra.mxu0 0.0
    %303 = vmatprep.subr.mxu0 0.0
    %304 = vmatpush1.msra.mxu0 0.0
    %305 = vmatprep.subr.mxu0 0.0
    %306 = vmatpush1.msra.mxu0 0.0
    %307 = vmatprep.subr.mxu0 0.0
    %308 = vmatpush1.msra.mxu0 0.0
    %309 = vmatprep.subr.mxu0 0.0
    %310 = vmatpush1.msra.mxu0 0.0
    %311 = vmatprep.subr.mxu0 0.0
    %312 = vmatpush1.msra.mxu0 0.0
    %313 = vmatprep.subr.mxu0 0.0
    %314 = vmatpush1.msra.mxu0 0.0
    %315 = vmatprep.subr.mxu0 0.0
    %316 = vmatpush1.msra.mxu0 0.0
    %317 = vmatprep.subr.mxu0 0.0
    %318 = vmatpush1.msra.mxu0 0.0
    %319 = vmatprep.mubr.f32.mxu0 0.0
    %320 = vmatmul.mubr.f32.gmra.mrb[0].mxu0 %v230
    %v321 = vpop.f32.mrb[0].mxu0
    %v322 = vadd.f32 %v253, %v321
    %v323 = vpop.f32.mrb[0].mxu0
    %324 = vmatprep.mubr.f32.mxu0 0.0
    %325 = vmatmul.mubr.f32.gmra.mrb[0].mxu0 %v231
    %v326 = vpop.f32.mrb[0].mxu0
    %v327 = vadd.f32 %v253, %v326
    %v328 = vpop.f32.mrb[0].mxu0
    %329 = vdwg.mxu0
    %330 = vst [vmem:[#allocation8] sm:$0xff] %v322
    %331 = vst [vmem:[#allocation8 + $0x8] sm:$0xff] %v327
    // Predicated region
    $region34: #{tpu_custom_call.1} parent=1 // pred_check
      _
    $region35: #{tpu_custom_call.1} parent=1 // pred_check_branch
      %333 = sbr.rel (0) target = $region37
    $region36: #{tpu_custom_call.1} parent=1 // pred_region
      %s335 = ssub.s32 256, 256
      %336 = vsyncadd [#allocation4], %s335
      %s337 = sshll.u32 [#allocation8], 4
      %s338 = int_to_ptr.vmem [resolvable:$true] %s337
      %343 = dma.vmem_to_hbm [thread:$0]  %s338, 256, %s5, [#allocation4], 128, 128, 8
    $region37: #{tpu_custom_call.1} parent=1 // pred_fallthru
      _
    // Predicated region
    $region38: #{tpu_custom_call.1} parent=1 // pred_check
      _
    $region39: #{tpu_custom_call.1} parent=1 // pred_check_branch
      %345 = sbr.rel (0) target = $region41
    $region40: #{tpu_custom_call.1} parent=1 // pred_region
      _
    $region41: #{tpu_custom_call.1} parent=1 // pred_fallthru
      _
    // Predicated region
    $region42: #{tpu_custom_call.1} parent=1 // pred_check
      _
    $region43: #{tpu_custom_call.1} parent=1 // pred_check_branch
      %347 = sbr.rel (0) target = $region45
    $region44: #{tpu_custom_call.1} parent=1 // pred_region
      %348 = dma.done [#allocation4], 256
    $region45: #{tpu_custom_call.1} parent=1 // pred_fallthru
      _
    // Predicated region
    $region46: #{tpu_custom_call.1} parent=1 // pred_check
      _
    $region47: #{tpu_custom_call.1} parent=1 // pred_check_branch
      %350 = sbr.rel (0) target = $region49
    $region48: #{tpu_custom_call.1} parent=1 // pred_region
      _
    $region49: #{tpu_custom_call.1} parent=1 // pred_fallthru
      _
    %351 = vsyncpa [#allocation3], 1
    %352 = vsyncpa [#allocation6], 1
    %353 = vsyncpa [#allocation4], 1

</llo_original>
